<compile_context>
chip_gen: v7x
topology: tpu7x:2x2x1
jax: 0.10.0
libtpu: 0.0.40
codegen_flags: <defaults>
</compile_context>

<pallas_src>
import jax
import jax.numpy as jnp
from jax.experimental import pallas as pl
from jax.experimental.pallas import tpu as pltpu


def _round_up(x, m):
    return ((x + m - 1) // m) * m


# --------------------------------------------------------------------------
# Pallas kernel: one (seq-tile, batch) block of  patches @ W + pos_adj
# --------------------------------------------------------------------------
def _vit_embed_kernel(patches_ref, w_ref, pos_ref, out_ref):
    # patches_ref: (1, TN, K_pad) bf16   rows: [zero CLS slot, patch_0, ...]
    # w_ref:       (K_pad, H)     bf16   projection weight (transposed, K-padded)
    # pos_ref:     (TN, H)        f32    pos embeddings with cls/bias folded in
    # out_ref:     (1, TN, H)     bf16   output embeddings tile
    proj = jnp.dot(patches_ref[0], w_ref[...],
                   preferred_element_type=jnp.float32)          # MXU, f32 acc
    out_ref[0] = (proj + pos_ref[...]).astype(out_ref.dtype)


def vit_embeddings(pixel_values, proj_weight, proj_bias, cls_token, pos_embed,
                   patch_size, *, seq_tile=1024, out_dtype=jnp.bfloat16):
    """ViTEmbeddings.forward (bool_masked_pos=None, interpolate_pos_encoding=False).

    pixel_values: (B, C, H, W)  float32, NCHW
    proj_weight:  (hidden, C, P, P)   (PyTorch Conv2d weight layout)
    proj_bias:    (hidden,)
    cls_token:    (1, 1, hidden)
    pos_embed:    (1, num_patches + 1, hidden)
    returns:      (B, num_patches + 1, hidden)  in `out_dtype` (bf16 default;
                  accuracy is bf16-limited regardless since the MXU operands
                  are bf16).
    """
    B, C, H, W = pixel_values.shape
    P = patch_size
    hidden = proj_weight.shape[0]
    nh, nw = H // P, W // P
    N = nh * nw
    K = C * P * P
    S = N + 1                                   # seq length incl. CLS
    K_pad = _round_up(K, 128)                   # lane-aligned contraction dim

    # --- sequence padding / tiling (full sublanes, no ragged last tile) -----
    S8 = _round_up(S, 8)
    if S8 <= seq_tile:
        TN = S8
        S_pad = S8
    else:
        TN = _round_up(seq_tile, 8)
        S_pad = _round_up(S, TN)
    n_seq_tiles = S_pad // TN

    # --- glue: im2col in bf16 (half the HBM->HBM copy bytes) ----------------
    # feature ordering (c, ph, pw) matches PyTorch conv-weight flattening.
    # Row 0 is a zero "CLS slot" row; its projection is exactly 0.  Trailing
    # zero rows (S..S_pad) are discarded after the call.
    # TODO(synk): the im2col transpose still materializes one (bf16) copy of
    # the pixel tensor in HBM; fusing it in-kernel needs rank-5 relayouts.
    x = pixel_values.astype(jnp.bfloat16).reshape(B, C, nh, P, nw, P)
    x = jnp.transpose(x, (0, 2, 4, 1, 3, 5)).reshape(B, N, K)
    patches = jnp.pad(x, ((0, 0), (1, S_pad - S), (0, K_pad - K)))

    # conv weight (hidden, C, P, P) -> (K_pad, hidden), zero-padded rows.
    w = proj_weight.reshape(hidden, K).T
    w = jnp.pad(w, ((0, K_pad - K), (0, 0))).astype(jnp.bfloat16)

    # Fold cls token (row 0) and bias (rows 1..N) into the position table.
    extra = jnp.concatenate(
        [cls_token.reshape(1, hidden).astype(jnp.float32),
         jnp.broadcast_to(proj_bias.astype(jnp.float32)[None, :], (N, hidden))],
        axis=0)                                                   # (S, hidden)
    pos_adj = pos_embed.reshape(S, hidden).astype(jnp.float32) + extra
    pos_adj = jnp.pad(pos_adj, ((0, S_pad - S), (0, 0)))          # (S_pad, hidden)

    # --- VMEM budget (double-buffered blocks) & cost estimate ---------------
    blk_bytes = (2 * TN * K_pad * 2          # patches blocks (bf16)
                 + 2 * K_pad * hidden * 2    # resident weight (bf16)
                 + 2 * TN * hidden * 4       # pos blocks (f32)
                 + 2 * TN * hidden * 2)      # out blocks (bf16)
    vmem_limit = min(max(int(blk_bytes * 1.5) + (8 << 20), 32 << 20), 64 << 20)

    cost = pl.CostEstimate(
        flops=2 * B * S_pad * K_pad * hidden,
        transcendentals=0,
        bytes_accessed=int(B * S_pad * K_pad * 2      # patches
                           + K_pad * hidden * 2       # weight
                           + S_pad * hidden * 4       # pos_adj
                           + B * S_pad * hidden * 2)) # out

    # Grid = (seq-tile, batch): batch innermost -> w block index is constant
    # and pos_adj only changes on the outer axis (no per-batch re-fetch).
    out = pl.pallas_call(
        _vit_embed_kernel,
        out_shape=jax.ShapeDtypeStruct((B, S_pad, hidden), out_dtype),
        grid_spec=pltpu.PrefetchScalarGridSpec(
            num_scalar_prefetch=0,
            grid=(n_seq_tiles, B),
            in_specs=[
                pl.BlockSpec((1, TN, K_pad), lambda j, b: (b, j, 0)),
                pl.BlockSpec((K_pad, hidden), lambda j, b: (0, 0)),   # resident
                pl.BlockSpec((TN, hidden), lambda j, b: (j, 0)),
            ],
            out_specs=pl.BlockSpec((1, TN, hidden), lambda j, b: (b, j, 0)),
        ),
        compiler_params=pltpu.CompilerParams(
            dimension_semantics=("parallel", "parallel"),
            vmem_limit_bytes=vmem_limit),
        cost_estimate=cost,
    )(patches, w, pos_adj)

    # Drop the zero-padded sequence rows.  Dropout: eval-mode identity.
    # TODO(synk): training-mode dropout (pltpu.prng_random_bits) not implemented.
    return out[:, :S, :]


# --------------------------------------------------------------------------
# Pure-JAX reference (f32) for correctness checking
# --------------------------------------------------------------------------
def vit_embeddings_ref(pixel_values, proj_weight, proj_bias, cls_token,
                       pos_embed, patch_size):
    B, C, H, W = pixel_values.shape
    P = patch_size
    hidden = proj_weight.shape[0]
    nh, nw = H // P, W // P
    x = pixel_values.reshape(B, C, nh, P, nw, P)
    x = jnp.transpose(x, (0, 2, 4, 1, 3, 5)).reshape(B, nh * nw, C * P * P)
    proj = x @ proj_weight.reshape(hidden, -1).T + proj_bias
    cls = jnp.broadcast_to(cls_token, (B, 1, hidden))
    emb = jnp.concatenate([cls, proj], axis=1)
    return emb + pos_embed


if __name__ == "__main__":
    # Small ViT config: image 16x16, patch 4, channels 4, hidden 32
    B, C, IMG, P, HID = 2, 4, 16, 4, 32
    N = (IMG // P) * (IMG // P)          # 16 patches, seq = 17

    key = jax.random.PRNGKey(0)
    k1, k2, k3, k4, k5 = jax.random.split(key, 5)

    pixel_values = jax.random.normal(k1, (B, C, IMG, IMG), dtype=jnp.float32)
    proj_weight = jax.random.normal(k2, (HID, C, P, P), dtype=jnp.float32) * 0.02
    proj_bias = jax.random.normal(k3, (HID,), dtype=jnp.float32) * 0.02
    cls_token = jax.random.normal(k4, (1, 1, HID), dtype=jnp.float32)
    pos_embed = jax.random.normal(k5, (1, N + 1, HID), dtype=jnp.float32)

    out = vit_embeddings(pixel_values, proj_weight, proj_bias, cls_token,
                         pos_embed, P)
    out = jax.block_until_ready(out)

    ref = vit_embeddings_ref(pixel_values, proj_weight, proj_bias, cls_token,
                             pos_embed, P)
    assert out.shape == (B, N + 1, HID), out.shape
    # bf16 MXU inputs + bf16 output -> loosened tolerance vs. the f32 reference.
    assert jnp.allclose(out.astype(jnp.float32), ref, atol=2e-2, rtol=2e-2), \
        "mismatch vs reference"

    print("KERNEL_OK")
</pallas_src>

<mosaic_0001>
module attributes {stable_mosaic.version = 11 : i64} {
  func.func @_vit_embed_kernel(%arg0: i32, %arg1: i32, %arg2: memref<1x24x128xbf16, #tpu.memory_space<vmem>>, %arg3: memref<128x32xbf16, #tpu.memory_space<vmem>>, %arg4: memref<24x32xf32, #tpu.memory_space<vmem>>, %arg5: memref<1x24x32xbf16, #tpu.memory_space<vmem>>) attributes {dimension_semantics = [#tpu.dimension_semantics<parallel>, #tpu.dimension_semantics<parallel>], iteration_bounds = array<i64: 1, 2>, scalar_prefetch = 0 : i64, scratch_operands = 0 : i64, tpu.core_type = #tpu.core_type<tc>, window_params = [{transform_indices = @transform_0, window_bounds = array<i64: 1, 24, 128>}, {pipeline_mode = #tpu.pipeline_mode<synchronous>, transform_indices = @transform_1, window_bounds = array<i64: 128, 32>}, {transform_indices = @transform_2, window_bounds = array<i64: 24, 32>}, {transform_indices = @transform_3, window_bounds = array<i64: 1, 24, 32>}]} {
    %c0 = arith.constant 0 : index
    %c0_0 = arith.constant 0 : index
    %c0_1 = arith.constant 0 : index
    %0 = vector.load %arg2[%c0, %c0_0, %c0_1] : memref<1x24x128xbf16, #tpu.memory_space<vmem>>, vector<1x24x128xbf16>
    %1 = vector.shape_cast %0 : vector<1x24x128xbf16> to vector<24x128xbf16>
    %c0_2 = arith.constant 0 : index
    %c0_3 = arith.constant 0 : index
    %2 = vector.load %arg3[%c0_2, %c0_3] : memref<128x32xbf16, #tpu.memory_space<vmem>>, vector<128x32xbf16>
    %cst = arith.constant dense<0.000000e+00> : vector<24x32xf32>
    %3 = tpu.matmul %1, %2, %cst {dimension_numbers = #tpu.dot_dimension_numbers<[1], [0], [0], [1], [0, 0, 1, 1], [], []>} : vector<24x128xbf16>, vector<128x32xbf16>, vector<24x32xf32> -> vector<24x32xf32>
    %c0_4 = arith.constant 0 : index
    %c0_5 = arith.constant 0 : index
    %4 = vector.load %arg4[%c0_4, %c0_5] : memref<24x32xf32, #tpu.memory_space<vmem>>, vector<24x32xf32>
    %5 = arith.addf %3, %4 : vector<24x32xf32>
    %6 = arith.truncf %5 : vector<24x32xf32> to vector<24x32xbf16>
    %c0_6 = arith.constant 0 : index
    %c0_7 = arith.constant 0 : index
    %c0_8 = arith.constant 0 : index
    %7 = vector.load %arg5[%c0_6, %c0_7, %c0_8] : memref<1x24x32xbf16, #tpu.memory_space<vmem>>, vector<1x24x32xbf16>
    %8 = vector.shape_cast %7 : vector<1x24x32xbf16> to vector<24x32xbf16>
    %9 = vector.shape_cast %6 : vector<24x32xbf16> to vector<1x24x32xbf16>
    tpu.vector_store %arg5[%c0_6, %c0_7, %c0_8], %9 {strides = array<i32>} : memref<1x24x32xbf16, #tpu.memory_space<vmem>>, vector<1x24x32xbf16>,
    return
  }
  func.func @transform_0(%arg0: i32, %arg1: i32) -> (i32, i32, i32) {
    %c0_i32 = arith.constant 0 : i32
    %c0_i32_0 = arith.constant 0 : i32
    return %arg1, %arg0, %c0_i32 : i32, i32, i32
  }
  func.func @transform_1(%arg0: i32, %arg1: i32) -> (i32, i32) {
    %c0_i32 = arith.constant 0 : i32
    %c0_i32_0 = arith.constant 0 : i32
    %c0_i32_1 = arith.constant 0 : i32
    return %c0_i32, %c0_i32_0 : i32, i32
  }
  func.func @transform_2(%arg0: i32, %arg1: i32) -> (i32, i32) {
    %c0_i32 = arith.constant 0 : i32
    %c0_i32_0 = arith.constant 0 : i32
    return %arg0, %c0_i32 : i32, i32
  }
  func.func @transform_3(%arg0: i32, %arg1: i32) -> (i32, i32, i32) {
    %c0_i32 = arith.constant 0 : i32
    %c0_i32_0 = arith.constant 0 : i32
    return %arg1, %arg0, %c0_i32 : i32, i32, i32
  }
}

</mosaic_0001>

<llo_original>
// kernel: tpu_custom_call.1
$region0: #{tpu_custom_call.1}
  #allocation0 [shape = 'u32[]', space=smem, size = 0x4, offset = 0x4, fixed_abs, tag = 'smem constant byte address 0x4 - core index']
  #allocation1 [shape = 'u32[144,128]{1,0:T(1,128)}', space=vmem, size = 0x12000, scoped, tag = 'internal scratch']
  %s0 = inlined_call_operand.vmem [shape: bf16[2,24,128], index: 0, kind: input, shape index: {}]
  %s1 = inlined_call_operand.vmem [shape: bf16[128,32], index: 1, kind: input, shape index: {}]
  %s2 = inlined_call_operand.vmem [shape: f32[24,32], index: 2, kind: input, shape index: {}]
  %s3 = inlined_call_operand.hbm [shape: bf16[2,24,32], index: 3, kind: output, shape index: {}]
  %s4 = sld [smem:[#allocation0]]
  $region45: #{tpu_custom_call.1} parent=0
    _
  %s6 = ssub.s32 1, %s4
  %s7 = scalar_select 0, %s6, %s4
  $region1: #{tpu_custom_call.1} parent=0
    #allocation2 [shape = 'u8[12288]{0}', space=vmem, size = 0x3000, scoped, tag = 'output window, operand 0']
    #allocation3 [shape = 's32[2]{0}', space=sflag, size = 0x8, scoped, tag = 'scoped memory for tpu_custom_call.1']
    %8 = vsyncpa [#allocation3], 0
    %s9 = scalar_lea.sflag [#allocation3], 1
    %10 = vsyncpa %s9, 0
    loop: start=0, step=1, limit=4
    $region2: #{tpu_custom_call.1} parent=1 // loop_pre_header
      _
    $region3: #{tpu_custom_call.1} parent=1 // loop_header
      %s12 = sphi 0, %s16
      %p13 = scmp.ge.s32.totalorder %s12, 4
      %s19 = sphi 0, %s31
      %s20 = sphi 0, %s27
      %s21 = sphi 0, %s19
      %s22 = sphi 0, %s20
      %s23 = sphi 0, %s21
      %s24 = sphi 0, %s22
      %s36 = sphi 0, %s38
      %s39 = sphi 0, %s36
      %s40 = sphi 0, %s39
      %s56 = sphi 0, %s40
      %s60 = sphi 0, %s60
      %s62 = sphi 0, %s60
      %s63 = sphi 0, %s62
      %s77 = sphi 0, %s63
      %s83 = sphi 0, %s85
      %s86 = sphi 0, %s83
      %s87 = sphi 0, %s86
      %s103 = sphi 0, %s87
      %s111 = sphi 0, %s113
      %s114 = sphi 0, %s111
      %s115 = sphi 0, %s114
      %s131 = sphi 0, %s115
    $region4: #{tpu_custom_call.1} parent=1 // loop_header_branch
      %15 = sbr.rel (%p13) target = $region8
    $region5: #{tpu_custom_call.1} parent=1 // loop_body
      %s17 = ssub.s32 %s12, 1
      %s18 = ssub.s32 %s12, 2
      %s25 = sadd.s32 1, %s20
      %p26 = scmp.ge.s32.totalorder %s25, 2
      %s27 = scalar_select %p26, 0, %s25
      %s28 = sadd.s32 1, %s19
      %s29 = scalar_select %p26, %s28, %s19
      %p30 = scmp.ge.s32.totalorder %s29, 1
      %s31 = scalar_select %p30, 0, %s29
      %s32 = ssub.s32 %s20, %s27
      %s33 = ssub.s32 %s19, %s31
      %s34 = sor.u32 %s32, %s33
      %p35 = scmp.eq.s32.totalorder %s34, 0
      %s37 = sadd.s32 %s36, 1
      %s38 = scalar_select %p35, %s36, %s37
      %p41 = pneg %p35
      %p42 = scmp.eq.s32.totalorder %s12, 1
      %p43 = por %p41, %p42
      %p44 = scmp.ne.s32.totalorder %s36, %s39
      %p45 = scmp.eq.s32.totalorder %s12, 0
      %p46 = por %p44, %p45
      %p47 = scmp.ne.s32.totalorder %s36, %s39
      %p48 = scmp.eq.s32.totalorder %s17, 1
      %p49 = por %p47, %p48
      %p50 = scmp.ne.s32.totalorder %s39, %s40
      %p51 = scmp.eq.s32.totalorder %s17, 0
      %p52 = por %p50, %p51
      %p53 = scmp.ne.s32.totalorder %s39, %s40
      %p54 = scmp.eq.s32.totalorder %s18, 1
      %p55 = por %p53, %p54
      %p57 = scmp.ne.s32.totalorder %s40, %s56
      %p58 = scmp.eq.s32.totalorder %s18, 0
      %p59 = por %p57, %p58
      %s61 = sadd.s32 %s60, 1
      %p64 = scmp.eq.s32.totalorder %s12, 1
      %p65 = scmp.ne.s32.totalorder %s60, %s62
      %p66 = scmp.eq.s32.totalorder %s12, 0
      %p67 = por %p65, %p66
      %p68 = scmp.ne.s32.totalorder %s60, %s62
      %p69 = scmp.eq.s32.totalorder %s17, 1
      %p70 = por %p68, %p69
      %p71 = scmp.ne.s32.totalorder %s62, %s63
      %p72 = scmp.eq.s32.totalorder %s17, 0
      %p73 = por %p71, %p72
      %p74 = scmp.ne.s32.totalorder %s62, %s63
      %p75 = scmp.eq.s32.totalorder %s18, 1
      %p76 = por %p74, %p75
      %p78 = scmp.ne.s32.totalorder %s63, %s77
      %p79 = scmp.eq.s32.totalorder %s18, 0
      %p80 = por %p78, %p79
      %s81 = ssub.s32 %s19, %s31
      %p82 = scmp.eq.s32.totalorder %s81, 0
      %s84 = sadd.s32 %s83, 1
      %s85 = scalar_select %p82, %s83, %s84
      %p88 = pneg %p82
      %p89 = scmp.eq.s32.totalorder %s12, 1
      %p90 = por %p88, %p89
      %p91 = scmp.ne.s32.totalorder %s83, %s86
      %p92 = scmp.eq.s32.totalorder %s12, 0
      %p93 = por %p91, %p92
      %p94 = scmp.ne.s32.totalorder %s83, %s86
      %p95 = scmp.eq.s32.totalorder %s17, 1
      %p96 = por %p94, %p95
      %p97 = scmp.ne.s32.totalorder %s86, %s87
      %p98 = scmp.eq.s32.totalorder %s17, 0
      %p99 = por %p97, %p98
      %p100 = scmp.ne.s32.totalorder %s86, %s87
      %p101 = scmp.eq.s32.totalorder %s18, 1
      %p102 = por %p100, %p101
      %p104 = scmp.ne.s32.totalorder %s87, %s103
      %p105 = scmp.eq.s32.totalorder %s18, 0
      %p106 = por %p104, %p105
      %s107 = ssub.s32 %s20, %s27
      %s108 = ssub.s32 %s19, %s31
      %s109 = sor.u32 %s107, %s108
      %p110 = scmp.eq.s32.totalorder %s109, 0
      %s112 = sadd.s32 %s111, 1
      %s113 = scalar_select %p110, %s111, %s112
      %p116 = pneg %p110
      %p117 = scmp.eq.s32.totalorder %s12, 1
      %p118 = por %p116, %p117
      %p119 = scmp.ne.s32.totalorder %s111, %s114
      %p120 = scmp.eq.s32.totalorder %s12, 0
      %p121 = por %p119, %p120
      %p122 = scmp.ne.s32.totalorder %s111, %s114
      %p123 = scmp.eq.s32.totalorder %s17, 1
      %p124 = por %p122, %p123
      %p125 = scmp.ne.s32.totalorder %s114, %s115
      %p126 = scmp.eq.s32.totalorder %s17, 0
      %p127 = por %p125, %p126
      %p128 = scmp.ne.s32.totalorder %s114, %s115
      %p129 = scmp.eq.s32.totalorder %s18, 1
      %p130 = por %p128, %p129
      %p132 = scmp.ne.s32.totalorder %s115, %s131
      %p133 = scmp.eq.s32.totalorder %s18, 0
      %p134 = por %p132, %p133
      %p135 = scmp.le.s32.totalorder 1, %s12
      %p136 = scmp.lt.s32.totalorder %s12, 3
      %p137 = pnand %p135, %p136
      %p138 = pneg %p137
      // Predicated region
      $region9: #{tpu_custom_call.1} parent=5 // pred_check
        _
      $region10: #{tpu_custom_call.1} parent=5 // pred_check_branch
        %140 = sbr.rel (%p137) target = $region12
      $region11: #{tpu_custom_call.1} parent=5 // pred_region
        %s141 = ssub.s32 %s12, 1
        // Predicated region
        $region13: #{tpu_custom_call.1} parent=11 // pred_check
          %p142 = pneg %p73
        $region14: #{tpu_custom_call.1} parent=11 // pred_check_branch
          %144 = sbr.rel (%p142) target = $region16
        $region15: #{tpu_custom_call.1} parent=11 // pred_region
          _
        $region16: #{tpu_custom_call.1} parent=11 // pred_fallthru
          _
        // Predicated region
        $region17: #{tpu_custom_call.1} parent=11 // pred_check
          %p145 = pneg %p99
        $region18: #{tpu_custom_call.1} parent=11 // pred_check_branch
          %147 = sbr.rel (%p145) target = $region20
        $region19: #{tpu_custom_call.1} parent=11 // pred_region
          %s148 = smul.u32 3, %s21
          %p149 = scmp.lt.s32.totalorder %s148, 2
          %s150 = scalar_select %p149, %s148, 2
          %s151 = smul.addr %s150, 8
          %s152 = scalar_lea.vmem %s2, %s151
          %s153 = smul.u32 3, %s21
        $region20: #{tpu_custom_call.1} parent=11 // pred_fallthru
          _
      $region12: #{tpu_custom_call.1} parent=5 // pred_fallthru
        _
      %p154 = scmp.lt.s32.totalorder %s12, 2
      // Predicated region
      $region21: #{tpu_custom_call.1} parent=5 // pred_check
        %p155 = pneg %p154
      $region22: #{tpu_custom_call.1} parent=5 // pred_check_branch
        %157 = sbr.rel (%p155) target = $region24
      $region23: #{tpu_custom_call.1} parent=5 // pred_region
        // Predicated region
        $region25: #{tpu_custom_call.1} parent=23 // pred_check
          %p158 = pneg %p46
        $region26: #{tpu_custom_call.1} parent=23 // pred_check_branch
          %160 = sbr.rel (%p158) target = $region28
        $region27: #{tpu_custom_call.1} parent=23 // pred_region
          %s161 = smul.u32 3, %s19
          %p162 = scmp.lt.s32.totalorder %s20, 1
          %s163 = scalar_select %p162, %s20, 1
          %p164 = scmp.lt.s32.totalorder %s161, 2
          %s165 = scalar_select %p164, %s161, 2
          %s166 = smul.addr %s163, 3
          %s167 = sadd.s32 %s165, %s166
          %s168 = smul.addr %s167, 4
          %s169 = scalar_lea.vmem %s0, %s168
          %s170 = smul.u32 3, %s19
        $region28: #{tpu_custom_call.1} parent=23 // pred_fallthru
          _
      $region24: #{tpu_custom_call.1} parent=5 // pred_fallthru
        _
      %p171 = scmp.le.s32.totalorder 1, %s12
      %p172 = scmp.lt.s32.totalorder %s12, 3
      %p173 = pnand %p171, %p172
      %p174 = pneg %p173
      // Predicated region
      $region29: #{tpu_custom_call.1} parent=5 // pred_check
        _
      $region30: #{tpu_custom_call.1} parent=5 // pred_check_branch
        %176 = sbr.rel (%p173) target = $region32
      $region31: #{tpu_custom_call.1} parent=5 // pred_region
        %s177 = ssub.s32 %s12, 1
        %s178 = smul.u32 3, %s21
        %p179 = scmp.lt.s32.totalorder %s22, 1
        %s180 = scalar_select %p179, %s22, 1
        %p181 = scmp.lt.s32.totalorder %s178, 2
        %s182 = scalar_select %p181, %s178, 2
        %s183 = smul.addr %s180, 3
        %s184 = sadd.s32 %s182, %s183
        %s185 = smul.addr %s184, 4
        %s186 = scalar_lea.vmem %s0, %s185
        %p187 = pneg %p52
        %p188 = pneg %p49
        %p189 = pneg %p73
        %p190 = pneg %p70
        %s191 = smul.u32 3, %s21
        %p192 = scmp.lt.s32.totalorder %s191, 2
        %s193 = scalar_select %p192, %s191, 2
        %s194 = smul.addr %s193, 8
        %s195 = scalar_lea.vmem %s2, %s194
        %p196 = pneg %p99
        %p197 = pneg %p96
        %p198 = pneg %p127
        %p199 = pneg %p124
        %s200 = sand.u32 %s114, 1
        %s201 = scalar_lea.sflag [#allocation3], %s200
        %s202 = sand.u32 %s114, 1
        %s203 = smul.addr %s202, 12
        %s204 = scalar_lea.vmem [#allocation2], %s203
        %s205 = smul.u32 3, %s21
        %p206 = scmp.lt.s32.totalorder %s22, 1
        %s207 = scalar_select %p206, %s22, 1
        %p208 = scmp.lt.s32.totalorder %s205, 2
        %s209 = scalar_select %p208, %s205, 2
        %s210 = smul.addr %s207, 3
        %s211 = sadd.s32 %s209, %s210
        %s212 = smul.addr %s211, 4
        %s213 = scalar_lea.vmem %s0, %s212
        %s214 = smul.u32 3, %s21
        %s215 = smul.u32 3, %s21
        %p216 = scmp.lt.s32.totalorder %s215, 2
        %s217 = scalar_select %p216, %s215, 2
        %s218 = smul.addr %s217, 8
        %s219 = scalar_lea.vmem %s2, %s218
        %s220 = smul.u32 3, %s21
        %s221 = smul.u32 3, %s21
        %v223 = vld [vmem:[%s213] sm:$0xf]
        %v224 = vld [vmem:[%s213 + $0x4] sm:$0xf]
        %v225 = vld [vmem:[%s213 + $0x8] sm:$0xf]
        %v226 = vld [vmem:[%s1] sm:$0xf]
        %v227 = vld [vmem:[%s1 + $0x4] sm:$0xf]
        %v228 = vld [vmem:[%s1 + $0x8] sm:$0xf]
        %v229 = vld [vmem:[%s1 + $0xc] sm:$0xf]
        %v230 = vld [vmem:[%s1 + $0x10] sm:$0xf]
        %v231 = vld [vmem:[%s1 + $0x14] sm:$0xf]
        %v232 = vld [vmem:[%s1 + $0x18] sm:$0xf]
        %v233 = vld [vmem:[%s1 + $0x1c] sm:$0xf]
        %v234 = vld [vmem:[%s1 + $0x20] sm:$0xf]
        %v235 = vld [vmem:[%s1 + $0x24] sm:$0xf]
        %v236 = vld [vmem:[%s1 + $0x28] sm:$0xf]
        %v237 = vld [vmem:[%s1 + $0x2c] sm:$0xf]
        %v238 = vld [vmem:[%s1 + $0x30] sm:$0xf]
        %v239 = vld [vmem:[%s1 + $0x34] sm:$0xf]
        %v240 = vld [vmem:[%s1 + $0x38] sm:$0xf]
        %v241 = vld [vmem:[%s1 + $0x3c] sm:$0xf]
        %v242 = vld [vmem:[%s219] sm:$0xff]
        %v243 = vld [vmem:[%s219 + $0x8] sm:$0xff]
        %v244 = vld [vmem:[%s219 + $0x10] sm:$0xff]
        %v248 = vunpack.c.l.b16 %v223
        %v249 = vunpack.c.l.b16 %v224
        %v250 = vunpack.c.l.b16 %v225
        %v251 = vpack.c.b16 %v249, %v248
        %v252 = vpack.c.b16 %v250, %v250
        %v271 = vunpack.c.l.b16 %v226
        %v272 = vunpack.c.l.b16 %v227
        %v273 = vunpack.c.l.b16 %v228
        %v274 = vunpack.c.l.b16 %v229
        %v275 = vunpack.c.l.b16 %v230
        %v276 = vunpack.c.l.b16 %v231
        %v277 = vunpack.c.l.b16 %v232
        %v278 = vunpack.c.l.b16 %v233
        %v279 = vunpack.c.l.b16 %v234
        %v280 = vunpack.c.l.b16 %v235
        %v281 = vunpack.c.l.b16 %v236
        %v282 = vunpack.c.l.b16 %v237
        %v283 = vunpack.c.l.b16 %v238
        %v284 = vunpack.c.l.b16 %v239
        %v285 = vunpack.c.l.b16 %v240
        %v286 = vunpack.c.l.b16 %v241
        %v287 = vpack.c.b16 %v272, %v271
        %v288 = vpack.c.b16 %v274, %v273
        %v289 = vpack.c.b16 %v276, %v275
        %v290 = vpack.c.b16 %v278, %v277
        %v291 = vpack.c.b16 %v280, %v279
        %v292 = vpack.c.b16 %v282, %v281
        %v293 = vpack.c.b16 %v284, %v283
        %v294 = vpack.c.b16 %v286, %v285
        %303 = vmatprep.subr.bf16.mxu0 0
        %304 = vmatpush1.bf16.msra.mxu0 %v287
        %305 = vmatprep.subr.bf16.mxu0 0
        %306 = vmatpush1.bf16.msra.mxu0 %v288
        %307 = vmatprep.subr.bf16.mxu0 0
        %308 = vmatpush1.bf16.msra.mxu0 %v289
        %309 = vmatprep.subr.bf16.mxu0 0
        %310 = vmatpush1.bf16.msra.mxu0 %v290
        %311 = vmatprep.subr.bf16.mxu0 0
        %312 = vmatpush1.bf16.msra.mxu0 %v291
        %313 = vmatprep.subr.bf16.mxu0 0
        %314 = vmatpush1.bf16.msra.mxu0 %v292
        %315 = vmatprep.subr.bf16.mxu0 0
        %316 = vmatpush1.bf16.msra.mxu0 %v293
        %317 = vmatprep.subr.bf16.mxu0 0
        %318 = vmatpush1.bf16.msra.mxu0 %v294
        %319 = vmatprep.subr.bf16.mxu0 0
        %320 = vmatpush1.bf16.msra.mxu0 0
        %321 = vmatprep.subr.bf16.mxu0 0
        %322 = vmatpush1.bf16.msra.mxu0 0
        %323 = vmatprep.subr.bf16.mxu0 0
        %324 = vmatpush1.bf16.msra.mxu0 0
        %325 = vmatprep.subr.bf16.mxu0 0
        %326 = vmatpush1.bf16.msra.mxu0 0
        %327 = vmatprep.subr.bf16.mxu0 0
        %328 = vmatpush1.bf16.msra.mxu0 0
        %329 = vmatprep.subr.bf16.mxu0 0
        %330 = vmatpush1.bf16.msra.mxu0 0
        %331 = vmatprep.subr.bf16.mxu0 0
        %332 = vmatpush1.bf16.msra.mxu0 0
        %333 = vmatprep.subr.bf16.mxu0 0
        %334 = vmatpush1.bf16.msra.mxu0 0
        %335 = vmatprep.mubr.bf16.mxu0 0
        %336 = vmatmul.mubr.bf16.gmra.mrb[0].mxu0 %v251
        %v337 = vpop.f32.mrb[0].mxu0
        %v338 = vadd.f32 %v242, %v337
        %v339 = vpop.f32.mrb[0].mxu0
        %v340 = vpop.f32.mrb[0].mxu0
        %v341 = vadd.f32 %v243, %v340
        %v342 = vpop.f32.mrb[0].mxu0
        %343 = vmatprep.mubr.bf16.mxu0 0
        %344 = vmatmul.mubr.bf16.gmra.mrb[0].mxu0 %v252
        %v345 = vpop.f32.mrb[0].mxu0
        %v346 = vadd.f32 %v244, %v345
        %v347 = vpop.f32.mrb[0].mxu0
        %v348 = vpop.f32.mrb[0].mxu0
        %v349 = vpop.f32.mrb[0].mxu0
        %350 = vdwg.mxu0
        %v351 = vpack.c.bf16 %v341, %v338
        %v352 = vpack.c.bf16 %v346, %v346
        %v355 = vunpack.c.l.b16 %v351
        %v356 = vunpack.c.h.b16 %v351
        %v357 = vunpack.c.l.b16 %v352
        %v358 = vpack.c.b16 %v355, %v355
        %v359 = vpack.c.b16 %v356, %v356
        %v360 = vpack.c.b16 %v357, %v357
        %vm364 = vcmask 257024
        %365 = vst.msk [vmem:[%s204] sm:$0xf] %vm364, %v358
        %366 = vst.msk [vmem:[%s204 + $0x4] sm:$0xf] %vm364, %v359
        %367 = vst.msk [vmem:[%s204 + $0x8] sm:$0xf] %vm364, %v360
        %s368 = sand.u32 %s114, 1
        %s369 = scalar_lea.sflag [#allocation3], %s368
        %s370 = sand.u32 %s114, 1
        %s371 = smul.addr %s370, 12
        %s372 = scalar_lea.vmem [#allocation2], %s371
        // Predicated region
        $region33: #{tpu_custom_call.1} parent=31 // pred_check
          %p373 = pneg %p124
        $region34: #{tpu_custom_call.1} parent=31 // pred_check_branch
          %375 = sbr.rel (%p373) target = $region36
        $region35: #{tpu_custom_call.1} parent=31 // pred_region
          %s376 = smul.u32 3, %s21
          %s378 = ssub.s32 192, 192
          %379 = vsyncadd %s369, %s378
          %s380 = smul.addr %s22, 3
          %s381 = sadd.s32 %s376, %s380
          %s382 = smul.addr %s381, 64
          %s383 = scalar_lea.hbm %s3, %s382
          %s384 = sshll.u32 %s372, 4
          %s385 = int_to_ptr.vmem [resolvable:$true] %s384
          %390 = dma.vmem_to_hbm [thread:$0]  %s385, 192, %s383, %s369, 64, 64, 4
        $region36: #{tpu_custom_call.1} parent=31 // pred_fallthru
          _
      $region32: #{tpu_custom_call.1} parent=5 // pred_fallthru
        _
      %p391 = scmp.le.s32.totalorder 2, %s12
      // Predicated region
      $region37: #{tpu_custom_call.1} parent=5 // pred_check
        %p392 = pneg %p391
      $region38: #{tpu_custom_call.1} parent=5 // pred_check_branch
        %394 = sbr.rel (%p392) target = $region40
      $region39: #{tpu_custom_call.1} parent=5 // pred_region
        %s395 = ssub.s32 %s12, 2
        // Predicated region
        $region41: #{tpu_custom_call.1} parent=39 // pred_check
          %p396 = pneg %p130
        $region42: #{tpu_custom_call.1} parent=39 // pred_check_branch
          %398 = sbr.rel (%p396) target = $region44
        $region43: #{tpu_custom_call.1} parent=39 // pred_region
          %s399 = sand.u32 %s115, 1
          %s400 = scalar_lea.sflag [#allocation3], %s399
          %s401 = sand.u32 %s115, 1
          %s402 = smul.addr %s401, 12
          %s403 = scalar_lea.vmem [#allocation2], %s402
          %404 = dma.done %s400, 192
        $region44: #{tpu_custom_call.1} parent=39 // pred_fallthru
          _
      $region40: #{tpu_custom_call.1} parent=5 // pred_fallthru
        _
    $region6: #{tpu_custom_call.1} parent=1 // loop_footer
      %s16 = sadd.s32 1, %s12
    $region7: #{tpu_custom_call.1} parent=1 // loop_footer_branch
      %11 = sbr.rel target = $region3
    $region8: #{tpu_custom_call.1} parent=1 // loop_exit
      _
    %405 = vsyncpa [#allocation3], 1
    %s406 = scalar_lea.sflag [#allocation3], 1
    %407 = vsyncpa %s406, 1

</llo_original>
